<compile_context>
chip_gen: v7x
topology: tpu7x:2x2x1
jax: 0.10.0
libtpu: 0.0.40
codegen_flags: <defaults>
</compile_context>

<pallas_src>
import jax
import jax.numpy as jnp
from jax.experimental import pallas as pl
from jax.experimental.pallas import tpu as pltpu

_LANE = 128
_SUBLANE = 8
# Conservative per-grid-step VMEM budget (bytes): fits the 32 MiB scoped
# default on v6e/v7x with headroom for Mosaic internal scratch.
_VMEM_BUDGET = 20 * 1024 * 1024
# Raise v5e's 16 MiB scoped default; still well under physical VMEM everywhere.
_VMEM_LIMIT = 32 * 1024 * 1024
# Below this many MACs the pallas_call/DMA setup overhead dominates.
_TINY_PROBLEM = 1 << 20


def _round_up(x, m):
    return ((x + m - 1) // m) * m


def _linear_kernel(x_ref, w_ref, b_ref, o_ref):
    # x_ref: (tm, K)  w_ref: (K, Np)  b_ref: (1, Np)  o_ref: (tm, Np)
    acc = jnp.dot(x_ref[...], w_ref[...], preferred_element_type=jnp.float32)
    o_ref[...] = (acc + b_ref[...]).astype(o_ref.dtype)


def _choose_tm(M, K, N_pad, x_bytes, o_bytes):
    """Row tile: as large as the VMEM budget allows (<= 1024), a multiple of 8
    (or the full extent for tiny M), split >= 2 ways when M is large so the
    grid can shard across v7x's 2 TensorCores."""
    if M <= _SUBLANE:
        return M  # full-extent block satisfies the (8, 128) rule
    # Double-buffered x/out row blocks + (worst case double-buffered) resident
    # weight + bias.
    fixed = 2 * K * N_pad * x_bytes + 2 * _SUBLANE * N_pad * 4
    per_row = 2 * (K * x_bytes + N_pad * o_bytes)
    tm_cap = max(_SUBLANE, (_VMEM_BUDGET - fixed) // per_row)
    tm = min(1024, tm_cap, _round_up(M, _SUBLANE))
    tm = max(_SUBLANE, (tm // _SUBLANE) * _SUBLANE)
    if M >= 512 and pl.cdiv(M, tm) < 2:
        tm = max(_SUBLANE, _round_up(pl.cdiv(M, 2), _SUBLANE))
    return int(tm)


def normal_head_iqn_forward(state_emb, weight, bias, n_assets, action_atoms,
                            *, compute_dtype=None, force_pallas=False):
    """state_emb: (B, T, d_model); weight: (d_model, n_assets*action_atoms)
    (transpose of the PyTorch nn.Linear weight); bias: (n_assets*action_atoms,).
    Returns (B, T, n_assets, action_atoms) in state_emb.dtype."""
    B, T, K = state_emb.shape
    N = n_assets * action_atoms
    M = B * T
    out_dtype = state_emb.dtype

    # Tiny problems: the whole op is a handful of vregs — let XLA fuse it.
    if not force_pallas and M * K * N < _TINY_PROBLEM:
        out = (state_emb.reshape(M, K) @ weight + bias).astype(out_dtype)
        return out.reshape(B, T, n_assets, action_atoms)

    x = state_emb.reshape(M, K)
    w = weight
    if compute_dtype is not None:
        x = x.astype(compute_dtype)
        w = w.astype(compute_dtype)

    # Lane-dense output: pad N to a multiple of 128 when the extra HBM write
    # traffic is small next to the X read (K >= 256) or N spans > one lane
    # group. The extra MXU columns are free (MXU is idle at small N).
    if N % _LANE != 0 and (K >= 256 or N > _LANE):
        N_pad = _round_up(N, _LANE)
        w = jnp.pad(w, ((0, 0), (0, N_pad - N)))
        b2d = jnp.pad(bias.astype(jnp.float32), (0, N_pad - N)).reshape(1, N_pad)
    else:
        N_pad = N
        b2d = bias.astype(jnp.float32).reshape(1, N_pad)

    out_bytes = jnp.dtype(out_dtype).itemsize
    tm = _choose_tm(M, K, N_pad, x.dtype.itemsize, out_bytes)
    grid = (pl.cdiv(M, tm),)

    cost = pl.CostEstimate(
        flops=2 * M * K * N_pad,
        transcendentals=0,
        bytes_accessed=(x.size * x.dtype.itemsize
                        + w.size * w.dtype.itemsize
                        + b2d.size * 4
                        + M * N_pad * out_bytes),
    )

    out = pl.pallas_call(
        _linear_kernel,
        out_shape=jax.ShapeDtypeStruct((M, N_pad), out_dtype),
        grid=grid,
        in_specs=[
            pl.BlockSpec((tm, K), lambda i: (i, 0)),      # pipelined row tiles
            pl.BlockSpec((K, N_pad), lambda i: (0, 0)),   # weight: VMEM-resident
            pl.BlockSpec((1, N_pad), lambda i: (0, 0)),   # bias:   VMEM-resident
        ],
        out_specs=pl.BlockSpec((tm, N_pad), lambda i: (i, 0)),
        compiler_params=pltpu.CompilerParams(
            dimension_semantics=("parallel",),
            vmem_limit_bytes=_VMEM_LIMIT,
        ),
        cost_estimate=cost,
    )(x, w, b2d)

    if N_pad != N:
        out = out[:, :N]
    return out.reshape(B, T, n_assets, action_atoms)


if __name__ == "__main__":
    key = jax.random.PRNGKey(0)

    def make_case(k, B, T, d_model, n_assets, action_atoms):
        N = n_assets * action_atoms
        k_x, k_w, k_b = jax.random.split(k, 3)
        state_emb = jax.random.normal(k_x, (B, T, d_model), dtype=jnp.float32)
        bound = 1.0 / (d_model ** 0.5)
        # PyTorch nn.Linear weight is (N, d_model); kernel takes (d_model, N).
        weight = jax.random.uniform(k_w, (d_model, N), minval=-bound,
                                    maxval=bound, dtype=jnp.float32)
        bias = jax.random.uniform(k_b, (N,), minval=-bound, maxval=bound,
                                  dtype=jnp.float32)
        return state_emb, weight, bias

    def reference(state_emb, weight, bias, n_assets, action_atoms):
        B, T, K = state_emb.shape
        return (state_emb.reshape(B * T, K) @ weight + bias).reshape(
            B, T, n_assets, action_atoms)

    k1, k2 = jax.random.split(key)

    # Case 1: tiny demo shapes, forced through the Pallas kernel
    # (auto path would bypass to XLA at this size).
    B1, T1, D1, A1, AT1 = 2, 8, 32, 4, 4
    s1, w1, b1 = make_case(k1, B1, T1, D1, A1, AT1)
    q1 = jax.block_until_ready(
        normal_head_iqn_forward(s1, w1, b1, A1, AT1, force_pallas=True))
    r1 = reference(s1, w1, b1, A1, AT1)
    assert q1.shape == (B1, T1, A1, AT1)
    assert jnp.allclose(q1, r1, atol=1e-5, rtol=1e-5)

    # Case 2: bigger (still small) head — exercises lane-dense N padding to
    # 128, the multi-step row grid, and the bf16 compute path.
    B2, T2, D2, A2, AT2 = 8, 64, 256, 4, 4
    s2, w2, b2 = make_case(k2, B2, T2, D2, A2, AT2)
    q2 = jax.block_until_ready(
        normal_head_iqn_forward(s2, w2, b2, A2, AT2, force_pallas=True))
    r2 = reference(s2, w2, b2, A2, AT2)
    assert q2.shape == (B2, T2, A2, AT2)
    assert jnp.allclose(q2, r2, atol=1e-5, rtol=1e-5)

    q2_bf16 = jax.block_until_ready(
        normal_head_iqn_forward(s2, w2, b2, A2, AT2,
                                compute_dtype=jnp.bfloat16,
                                force_pallas=True))
    assert jnp.allclose(q2_bf16, r2, atol=5e-2, rtol=5e-2)

    # Case 3: tiny auto path — bypasses Pallas, XLA fuses the matmul.
    q3 = jax.block_until_ready(
        normal_head_iqn_forward(s1, w1, b1, A1, AT1))
    assert jnp.allclose(q3, r1, atol=1e-5, rtol=1e-5)

    print("KERNEL_OK")
</pallas_src>

<mosaic_0001>
module attributes {stable_mosaic.version = 11 : i64} {
  func.func @_linear_kernel(%arg0: i32, %arg1: memref<16x32xf32, #tpu.memory_space<vmem>>, %arg2: memref<32x16xf32, #tpu.memory_space<vmem>>, %arg3: memref<1x16xf32, #tpu.memory_space<vmem>>, %arg4: memref<16x16xf32, #tpu.memory_space<vmem>>) attributes {dimension_semantics = [#tpu.dimension_semantics<parallel>], iteration_bounds = array<i64: 1>, scalar_prefetch = 0 : i64, scratch_operands = 0 : i64, tpu.core_type = #tpu.core_type<tc>, window_params = [{transform_indices = @transform_0, window_bounds = array<i64: 16, 32>}, {pipeline_mode = #tpu.pipeline_mode<synchronous>, transform_indices = @transform_1, window_bounds = array<i64: 32, 16>}, {pipeline_mode = #tpu.pipeline_mode<synchronous>, transform_indices = @transform_2, window_bounds = array<i64: 1, 16>}, {transform_indices = @transform_3, window_bounds = array<i64: 16, 16>}]} {
    %c0 = arith.constant 0 : index
    %c0_0 = arith.constant 0 : index
    %0 = vector.load %arg1[%c0, %c0_0] : memref<16x32xf32, #tpu.memory_space<vmem>>, vector<16x32xf32>
    %c0_1 = arith.constant 0 : index
    %c0_2 = arith.constant 0 : index
    %1 = vector.load %arg2[%c0_1, %c0_2] : memref<32x16xf32, #tpu.memory_space<vmem>>, vector<32x16xf32>
    %cst = arith.constant dense<0.000000e+00> : vector<16x16xf32>
    %2 = tpu.matmul %0, %1, %cst {dimension_numbers = #tpu.dot_dimension_numbers<[1], [0], [0], [1], [0, 0, 1, 1], [], []>} : vector<16x32xf32>, vector<32x16xf32>, vector<16x16xf32> -> vector<16x16xf32>
    %c0_3 = arith.constant 0 : index
    %c0_4 = arith.constant 0 : index
    %3 = vector.load %arg3[%c0_3, %c0_4] : memref<1x16xf32, #tpu.memory_space<vmem>>, vector<1x16xf32>
    %4 = vector.broadcast %3 : vector<1x16xf32> to vector<16x16xf32>
    %5 = arith.addf %2, %4 : vector<16x16xf32>
    %c0_5 = arith.constant 0 : index
    %c0_6 = arith.constant 0 : index
    %6 = vector.load %arg4[%c0_5, %c0_6] : memref<16x16xf32, #tpu.memory_space<vmem>>, vector<16x16xf32>
    tpu.vector_store %arg4[%c0_5, %c0_6], %5 {strides = array<i32>} : memref<16x16xf32, #tpu.memory_space<vmem>>, vector<16x16xf32>,
    return
  }
  func.func @transform_0(%arg0: i32) -> (i32, i32) {
    %c0_i32 = arith.constant 0 : i32
    %c0_i32_0 = arith.constant 0 : i32
    return %arg0, %c0_i32 : i32, i32
  }
  func.func @transform_1(%arg0: i32) -> (i32, i32) {
    %c0_i32 = arith.constant 0 : i32
    %c0_i32_0 = arith.constant 0 : i32
    %c0_i32_1 = arith.constant 0 : i32
    return %c0_i32, %c0_i32_0 : i32, i32
  }
  func.func @transform_2(%arg0: i32) -> (i32, i32) {
    %c0_i32 = arith.constant 0 : i32
    %c0_i32_0 = arith.constant 0 : i32
    %c0_i32_1 = arith.constant 0 : i32
    return %c0_i32, %c0_i32_0 : i32, i32
  }
  func.func @transform_3(%arg0: i32) -> (i32, i32) {
    %c0_i32 = arith.constant 0 : i32
    %c0_i32_0 = arith.constant 0 : i32
    return %arg0, %c0_i32 : i32, i32
  }
}

</mosaic_0001>

<llo_original>
// kernel: tpu_custom_call.1
$region0: #{tpu_custom_call.1}
  #allocation0 [shape = 'u32[]', space=smem, size = 0x4, offset = 0x4, fixed_abs, tag = 'smem constant byte address 0x4 - core index']
  #allocation1 [shape = 'u32[144,128]{1,0:T(1,128)}', space=vmem, size = 0x12000, scoped, tag = 'internal scratch']
  %s0 = inlined_call_operand.vmem [shape: f32[16,32], index: 0, kind: input, shape index: {}]
  %s1 = inlined_call_operand.vmem [shape: f32[32,16], index: 1, kind: input, shape index: {}]
  %s2 = inlined_call_operand.vmem [shape: f32[1,16], index: 2, kind: input, shape index: {}]
  %s3 = inlined_call_operand.hbm [shape: f32[16,16], index: 3, kind: output, shape index: {}]
  %s4 = sld [smem:[#allocation0]]
  $region22: #{tpu_custom_call.1} parent=0
    _
  %s6 = ssub.s32 1, %s4
  %s7 = scalar_select 0, %s6, %s4
  $region1: #{tpu_custom_call.1} parent=0
    #allocation2 [shape = 'u8[8192]{0}', space=vmem, size = 0x2000, scoped, tag = 'output window, operand 0, single buffered']
    #allocation3 [shape = 's32[1]{0}', space=sflag, size = 0x4, scoped, tag = 'scoped memory for tpu_custom_call.1']
    %8 = vsyncpa [#allocation3], 0
    // Predicated region
    $region2: #{tpu_custom_call.1} parent=1 // pred_check
      _
    $region3: #{tpu_custom_call.1} parent=1 // pred_check_branch
      %10 = sbr.rel (0) target = $region5
    $region4: #{tpu_custom_call.1} parent=1 // pred_region
      _
    $region5: #{tpu_custom_call.1} parent=1 // pred_fallthru
      _
    // Predicated region
    $region6: #{tpu_custom_call.1} parent=1 // pred_check
      _
    $region7: #{tpu_custom_call.1} parent=1 // pred_check_branch
      %12 = sbr.rel (0) target = $region9
    $region8: #{tpu_custom_call.1} parent=1 // pred_region
      _
    $region9: #{tpu_custom_call.1} parent=1 // pred_fallthru
      _
    // Predicated region
    $region10: #{tpu_custom_call.1} parent=1 // pred_check
      _
    $region11: #{tpu_custom_call.1} parent=1 // pred_check_branch
      %14 = sbr.rel (0) target = $region13
    $region12: #{tpu_custom_call.1} parent=1 // pred_region
      _
    $region13: #{tpu_custom_call.1} parent=1 // pred_fallthru
      _
    %v15 = vld [vmem:[%s0] sm:$0xff]
    %v16 = vld [vmem:[%s0 + $0x8] sm:$0xff]
    %v17 = vld [vmem:[%s1] sm:$0xff]
    %v18 = vld [vmem:[%s1 + $0x8] sm:$0xff]
    %v19 = vld [vmem:[%s1 + $0x10] sm:$0xff]
    %v20 = vld [vmem:[%s1 + $0x18] sm:$0xff]
    %v21 = vld [vmem:[%s2] sm:$0x1]
    %v23 = vlaneseq
    %v24 = vshrl.u32 %v23, 7
    %v25 = vsub.s32 0, %v24
    %v26 = vrot.slane %v21, %v25
    %vm28 = vcmask 261120
    %v30 = vsel %vm28, %v15, 0
    %v33 = vsel %vm28, %v16, 0
    %35 = vmatprep.subr.mxu0 0.0
    %36 = vmatpush1.msra.mxu0 %v17
    %37 = vmatprep.subr.mxu0 0.0
    %38 = vmatpush1.msra.mxu0 %v18
    %39 = vmatprep.subr.mxu0 0.0
    %40 = vmatpush1.msra.mxu0 %v19
    %41 = vmatprep.subr.mxu0 0.0
    %42 = vmatpush1.msra.mxu0 %v20
    %43 = vmatprep.subr.mxu0 0.0
    %44 = vmatpush1.msra.mxu0 0.0
    %45 = vmatprep.subr.mxu0 0.0
    %46 = vmatpush1.msra.mxu0 0.0
    %47 = vmatprep.subr.mxu0 0.0
    %48 = vmatpush1.msra.mxu0 0.0
    %49 = vmatprep.subr.mxu0 0.0
    %50 = vmatpush1.msra.mxu0 0.0
    %51 = vmatprep.subr.mxu0 0.0
    %52 = vmatpush1.msra.mxu0 0.0
    %53 = vmatprep.subr.mxu0 0.0
    %54 = vmatpush1.msra.mxu0 0.0
    %55 = vmatprep.subr.mxu0 0.0
    %56 = vmatpush1.msra.mxu0 0.0
    %57 = vmatprep.subr.mxu0 0.0
    %58 = vmatpush1.msra.mxu0 0.0
    %59 = vmatprep.subr.mxu0 0.0
    %60 = vmatpush1.msra.mxu0 0.0
    %61 = vmatprep.subr.mxu0 0.0
    %62 = vmatpush1.msra.mxu0 0.0
    %63 = vmatprep.subr.mxu0 0.0
    %64 = vmatpush1.msra.mxu0 0.0
    %65 = vmatprep.subr.mxu0 0.0
    %66 = vmatpush1.msra.mxu0 0.0
    %67 = vmatprep.subr.mxu0 0.0
    %68 = vmatpush1.msra.mxu0 0.0
    %69 = vmatprep.subr.mxu0 0.0
    %70 = vmatpush1.msra.mxu0 0.0
    %71 = vmatprep.subr.mxu0 0.0
    %72 = vmatpush1.msra.mxu0 0.0
    %73 = vmatprep.subr.mxu0 0.0
    %74 = vmatpush1.msra.mxu0 0.0
    %75 = vmatprep.subr.mxu0 0.0
    %76 = vmatpush1.msra.mxu0 0.0
    %77 = vmatprep.subr.mxu0 0.0
    %78 = vmatpush1.msra.mxu0 0.0
    %79 = vmatprep.subr.mxu0 0.0
    %80 = vmatpush1.msra.mxu0 0.0
    %81 = vmatprep.subr.mxu0 0.0
    %82 = vmatpush1.msra.mxu0 0.0
    %83 = vmatprep.subr.mxu0 0.0
    %84 = vmatpush1.msra.mxu0 0.0
    %85 = vmatprep.subr.mxu0 0.0
    %86 = vmatpush1.msra.mxu0 0.0
    %87 = vmatprep.subr.mxu0 0.0
    %88 = vmatpush1.msra.mxu0 0.0
    %89 = vmatprep.subr.mxu0 0.0
    %90 = vmatpush1.msra.mxu0 0.0
    %91 = vmatprep.subr.mxu0 0.0
    %92 = vmatpush1.msra.mxu0 0.0
    %93 = vmatprep.subr.mxu0 0.0
    %94 = vmatpush1.msra.mxu0 0.0
    %95 = vmatprep.subr.mxu0 0.0
    %96 = vmatpush1.msra.mxu0 0.0
    %97 = vmatprep.subr.mxu0 0.0
    %98 = vmatpush1.msra.mxu0 0.0
    %99 = vmatprep.mubr.f32.mxu0 0.0
    %100 = vmatmul.mubr.f32.gmra.mrb[0].mxu0 %v30
    %v101 = vpop.f32.mrb[0].mxu0
    %v102 = vadd.f32 %v26, %v101
    %v103 = vpop.f32.mrb[0].mxu0
    %104 = vmatprep.mubr.f32.mxu0 0.0
    %105 = vmatmul.mubr.f32.gmra.mrb[0].mxu0 %v33
    %v106 = vpop.f32.mrb[0].mxu0
    %v107 = vadd.f32 %v26, %v106
    %v108 = vpop.f32.mrb[0].mxu0
    %109 = vdwg.mxu0
    %vm110 = vcmask 130048
    %111 = vst.msk [vmem:[#allocation2] sm:$0xff] %vm110, %v102
    %112 = vst.msk [vmem:[#allocation2 + $0x8] sm:$0xff] %vm110, %v107
    // Predicated region
    $region14: #{tpu_custom_call.1} parent=1 // pred_check
      _
    $region15: #{tpu_custom_call.1} parent=1 // pred_check_branch
      %114 = sbr.rel (0) target = $region17
    $region16: #{tpu_custom_call.1} parent=1 // pred_region
      %s116 = ssub.s32 256, 256
      %117 = vsyncadd [#allocation3], %s116
      %s118 = sshll.u32 [#allocation2], 4
      %s119 = int_to_ptr.vmem [resolvable:$true] %s118
      %124 = dma.vmem_to_hbm [thread:$0]  %s119, 256, %s3, [#allocation3], 128, 128, 8
    $region17: #{tpu_custom_call.1} parent=1 // pred_fallthru
      _
    // Predicated region
    $region18: #{tpu_custom_call.1} parent=1 // pred_check
      _
    $region19: #{tpu_custom_call.1} parent=1 // pred_check_branch
      %126 = sbr.rel (0) target = $region21
    $region20: #{tpu_custom_call.1} parent=1 // pred_region
      %127 = dma.done [#allocation3], 256
    $region21: #{tpu_custom_call.1} parent=1 // pred_fallthru
      _
    %128 = vsyncpa [#allocation3], 1

</llo_original>
